<compile_context>
chip_gen: v6e
topology: v6e:2x2x1
jax: 0.10.0
libtpu: 0.0.40
codegen_flags: <defaults>
</compile_context>

<pallas_src>
import jax
import jax.numpy as jnp
import numpy as np
from jax.experimental import pallas as pl
from jax.experimental.pallas import tpu as pltpu


def stgcn_kernel(xflat_ref, wconv_ref, bconv_ref, gamma_ref, beta_ref,
                 ssum_ref, sbcast_ref, wgcn_ref, adj_ref, bgcn_ref, out_ref):
    # xflat_ref : [N, (T+2)*C_in]        bf16  node-major, time-padded, channel-minor
    # wconv_ref : [(T+2)*C_in, T*C_out]  bf16  banded (Toeplitz) conv-as-matmul weight
    # bconv_ref : [1, T*C_out]           f32   conv bias tiled over T
    # gamma/beta: [1, C_out]             f32   InstanceNorm affine (affine=True in the spec)
    # ssum_ref  : [T*C_out, C_out]       f32   exact 0/1 "sum over T" matrix
    # sbcast_ref: [C_out, T*C_out]       f32   exact 0/1 "tile over T" matrix (= ssum.T)
    # wgcn_ref  : [T*C_out, T*C_out]     bf16  block-diag(T copies) of gcn W^T
    # adj_ref   : [N, N]                 bf16  dense GCN-normalized adjacency (out = A @ x)
    # bgcn_ref  : [1, T*C_out]           f32   gcn bias tiled over T
    # out_ref   : [N, T*C_out]           f32   lane-dense output slab
    tc, c_out = ssum_ref.shape
    inv_t = 1.0 / (tc // c_out)

    # (1) temporal Conv1d: every tap and every timestep in a single MXU matmul
    y = jnp.dot(xflat_ref[...], wconv_ref[...],
                preferred_element_type=jnp.float32) + bconv_ref[...]       # [N, T*C] f32

    # (2) InstanceNorm1d over the temporal axis, single-pass stats (E[y], E[y^2]).
    #     The 0/1 reduction / broadcast matmuls are exact, so the norm stays full f32.
    s = ssum_ref[...]
    mean = jnp.dot(y, s, preferred_element_type=jnp.float32) * inv_t        # [N, C]
    ex2 = jnp.dot(y * y, s, preferred_element_type=jnp.float32) * inv_t     # [N, C]
    var = ex2 - mean * mean
    scale = gamma_ref[...] * jax.lax.rsqrt(var + 1e-5)                      # [N, C]
    shift = beta_ref[...] - mean * scale
    sb = sbcast_ref[...]
    scale_t = jnp.dot(scale, sb, preferred_element_type=jnp.float32)        # [N, T*C]
    shift_t = jnp.dot(shift, sb, preferred_element_type=jnp.float32)        # [N, T*C]
    ycomb = jnp.maximum(y * scale_t + shift_t, 0.0)                         # ReLU, f32

    # (3) GCNConv for all timesteps at once:
    #     per-t feature transform via a block-diagonal W^T, then one batched aggregation.
    h = jnp.dot(ycomb.astype(jnp.bfloat16), wgcn_ref[...],
                preferred_element_type=jnp.float32)                         # [N, T*C]
    agg = jnp.dot(adj_ref[...], h.astype(jnp.bfloat16),
                  preferred_element_type=jnp.float32)                       # [N, T*C]

    # single unmasked, lane-dense (256-lane) store
    out_ref[...] = jnp.maximum(agg + bgcn_ref[...], 0.0)


def build_normalized_adjacency(edge_index, edge_weight, num_nodes, dtype=jnp.float32):
    """F.softmax(edge_weight, dim=0) followed by PyG GCNConv's gcn_norm:
    add_remaining_self_loops (existing self-loop weights are preserved, missing ones get
    fill value 1.0) + symmetric D^-1/2 A D^-1/2 normalization, materialized densely so the
    kernel can compute out = A_norm @ x."""
    src, dst = edge_index[0], edge_index[1]
    ew = jax.nn.softmax(edge_weight.astype(jnp.float32))
    is_loop = src == dst

    # off-diagonal entries: scatter-add softmaxed weights of the non-loop edges
    adj = jnp.zeros((num_nodes, num_nodes), jnp.float32)
    adj = adj.at[dst, src].add(jnp.where(is_loop, 0.0, ew))

    # diagonal: keep existing self-loop weight where present, otherwise fill with 1.0
    loop_w = jnp.zeros((num_nodes,), jnp.float32).at[dst].add(jnp.where(is_loop, ew, 0.0))
    has_loop = jnp.zeros((num_nodes,), jnp.float32).at[dst].add(
        jnp.where(is_loop, 1.0, 0.0)) > 0
    adj = adj + jnp.diag(jnp.where(has_loop, loop_w, 1.0))

    # symmetric GCN normalization (degree over incoming edge weights)
    deg = jnp.sum(adj, axis=1)
    dinv = jnp.where(deg > 0, jax.lax.rsqrt(deg), 0.0)
    return (dinv[:, None] * adj * dinv[None, :]).astype(dtype)


def stgcn_forward(x_stacked, edge_index, edge_weight, params):
    # x_stacked: [T, N, C_in]  (== torch.stack(x))
    T, N, C_in = x_stacked.shape
    C_out = params["conv_w"].shape[0]
    TC = T * C_out
    f32, bf16 = jnp.float32, jnp.bfloat16

    # ---- wrapper-side layout plumbing (cheap XLA work, outside the kernel) ----
    # node-major, time-padded, channel-minor input slab
    x_nm = jnp.transpose(x_stacked, (1, 0, 2))                  # [N, T, C_in]
    xpad = jnp.pad(x_nm, ((0, 0), (1, 1), (0, 0)))              # [N, T+2, C_in]
    xflat = xpad.reshape(N, (T + 2) * C_in).astype(bf16)        # [N, (T+2)*C_in]

    # conv as one matmul: banded (Toeplitz) weight [(T+2)*C_in, T*C_out]
    wtaps = jnp.transpose(params["conv_w"], (2, 1, 0))          # [3, C_in, C_out] = W_k^T
    wconv_big = jnp.zeros(((T + 2) * C_in, TC), f32)
    for t in range(T):
        for k in range(3):
            wconv_big = wconv_big.at[(t + k) * C_in:(t + k + 1) * C_in,
                                     t * C_out:(t + 1) * C_out].set(wtaps[k])
    wconv_big = wconv_big.astype(bf16)

    # per-channel vectors tiled over T so they broadcast over the [N, T*C_out] slab
    bconv_t = jnp.tile(params["conv_b"], T)[None, :]            # [1, T*C_out]
    bgcn_t = jnp.tile(params["gcn_b"], T)[None, :]              # [1, T*C_out]

    # exact 0/1 "sum over T" and "tile over T" matrices for the instance-norm stats
    eye = jnp.eye(C_out, dtype=f32)
    ssum = jnp.tile(eye, (T, 1))                                # [T*C_out, C_out]
    sbcast = jnp.tile(eye, (1, T))                              # [C_out, T*C_out]

    # GCN feature transform for all T timesteps at once: block-diagonal W^T
    wgcn_bd = jnp.kron(jnp.eye(T, dtype=f32), params["gcn_w"].T).astype(bf16)

    # dense GCN-normalized adjacency (edge softmax + self loops + sym norm)
    adj = build_normalized_adjacency(edge_index, edge_weight, N).astype(bf16)

    out_flat = pl.pallas_call(
        stgcn_kernel,
        out_shape=jax.ShapeDtypeStruct((N, TC), f32),
        grid=(1,),
        in_specs=[
            pl.BlockSpec((N, (T + 2) * C_in), lambda i: (0, 0)),
            pl.BlockSpec(((T + 2) * C_in, TC), lambda i: (0, 0)),
            pl.BlockSpec((1, TC), lambda i: (0, 0)),
            pl.BlockSpec((1, C_out), lambda i: (0, 0)),
            pl.BlockSpec((1, C_out), lambda i: (0, 0)),
            pl.BlockSpec((TC, C_out), lambda i: (0, 0)),
            pl.BlockSpec((C_out, TC), lambda i: (0, 0)),
            pl.BlockSpec((TC, TC), lambda i: (0, 0)),
            pl.BlockSpec((N, N), lambda i: (0, 0)),
            pl.BlockSpec((1, TC), lambda i: (0, 0)),
        ],
        out_specs=pl.BlockSpec((N, TC), lambda i: (0, 0)),
        compiler_params=pltpu.CompilerParams(dimension_semantics=("arbitrary",)),
    )(
        xflat, wconv_big, bconv_t,
        params["in_gamma"][None, :], params["in_beta"][None, :],
        ssum, sbcast, wgcn_bd, adj, bgcn_t,
    )

    # unpack the lane-dense slab back to the module's layout: list over t of [N, C_out]
    return jnp.transpose(out_flat.reshape(N, T, C_out), (1, 0, 2))   # [T, N, C_out]


def reference_forward(x_stacked, edge_index, edge_weight, params,
                      matmul_dtype=jnp.float32):
    """Straightforward JAX port of the PyTorch module. `matmul_dtype` controls the
    precision of the matmul operands (the kernel feeds the MXU bf16 operands with f32
    accumulation, so pass jnp.bfloat16 for a precision-matched check)."""
    T, N, C_in = x_stacked.shape
    C_out = params["conv_w"].shape[0]
    cast = lambda a: a.astype(matmul_dtype)

    xpad = jnp.pad(x_stacked, ((1, 1), (0, 0), (0, 0)))
    wtaps = jnp.transpose(params["conv_w"], (2, 1, 0))           # [3, C_in, C_out]
    y = jnp.zeros((T, N, C_out), jnp.float32)
    for k in range(3):
        y = y + jnp.einsum("tnc,cd->tnd", cast(xpad[k:k + T]), cast(wtaps[k]),
                           preferred_element_type=jnp.float32)
    y = y + params["conv_b"]

    mean = y.mean(axis=0, keepdims=True)
    var = ((y - mean) ** 2).mean(axis=0, keepdims=True)
    ycomb = jnp.maximum((y - mean) * jax.lax.rsqrt(var + 1e-5) * params["in_gamma"]
                        + params["in_beta"], 0.0)

    adj = build_normalized_adjacency(edge_index, edge_weight, N)
    h = jnp.einsum("tnc,dc->tnd", cast(ycomb), cast(params["gcn_w"]),
                   preferred_element_type=jnp.float32)
    out = jnp.einsum("ij,tjd->tid", cast(adj), cast(h),
                     preferred_element_type=jnp.float32) + params["gcn_b"]
    return jnp.maximum(out, 0.0)


if __name__ == "__main__":
    T, N, C_in, C_out = 8, 16, 4, 32   # seq=8, nodes=16, in_channels=4, out_channels=32

    key = jax.random.PRNGKey(0)
    ks = jax.random.split(key, 8)
    params = {
        "conv_w":   0.2 * jax.random.normal(ks[0], (C_out, C_in, 3), jnp.float32),
        "conv_b":   0.1 * jax.random.normal(ks[1], (C_out,), jnp.float32),
        "in_gamma": 1.0 + 0.1 * jax.random.normal(ks[2], (C_out,), jnp.float32),
        "in_beta":  0.1 * jax.random.normal(ks[3], (C_out,), jnp.float32),
        "gcn_w":    0.2 * jax.random.normal(ks[4], (C_out, C_out), jnp.float32),  # [out, in]
        "gcn_b":    0.1 * jax.random.normal(ks[5], (C_out,), jnp.float32),
    }

    # inputs: list of T node-feature matrices, stacked -> [T, N, C_in]
    x_stacked = jax.random.normal(ks[6], (T, N, C_in), jnp.float32)

    # bidirectional ring graph + two pre-existing self-loops (exercises the
    # add_remaining_self_loops handling: existing loop weights must be preserved)
    src = np.concatenate([np.arange(N), (np.arange(N) + 1) % N, [0, 3]]).astype(np.int32)
    dst = np.concatenate([(np.arange(N) + 1) % N, np.arange(N), [0, 3]]).astype(np.int32)
    edge_index = jnp.asarray(np.stack([src, dst]))                     # [2, 2N+2]
    edge_weight = jax.random.uniform(ks[7], (edge_index.shape[1],), jnp.float32)

    out = jax.jit(stgcn_forward)(x_stacked, edge_index, edge_weight, params)
    out = jax.block_until_ready(out)

    # strict check against a reference using the same bf16-operand / f32-accumulate policy
    ref_bf16 = jax.block_until_ready(
        reference_forward(x_stacked, edge_index, edge_weight, params,
                          matmul_dtype=jnp.bfloat16))
    np.testing.assert_allclose(np.asarray(out), np.asarray(ref_bf16), rtol=5e-3, atol=5e-3)

    # sanity band against the full-f32 spec semantics (bf16 MXU-operand rounding only)
    ref_f32 = jax.block_until_ready(
        reference_forward(x_stacked, edge_index, edge_weight, params,
                          matmul_dtype=jnp.float32))
    np.testing.assert_allclose(np.asarray(out), np.asarray(ref_f32), rtol=3e-2, atol=3e-2)

    print("KERNEL_OK")
</pallas_src>

<mosaic_0001>
module attributes {stable_mosaic.version = 11 : i64} {
  func.func @stgcn_kernel(%arg0: i32, %arg1: memref<16x40xbf16, #tpu.memory_space<vmem>>, %arg2: memref<40x256xbf16, #tpu.memory_space<vmem>>, %arg3: memref<1x256xf32, #tpu.memory_space<vmem>>, %arg4: memref<1x32xf32, #tpu.memory_space<vmem>>, %arg5: memref<1x32xf32, #tpu.memory_space<vmem>>, %arg6: memref<256x32xf32, #tpu.memory_space<vmem>>, %arg7: memref<32x256xf32, #tpu.memory_space<vmem>>, %arg8: memref<256x256xbf16, #tpu.memory_space<vmem>>, %arg9: memref<16x16xbf16, #tpu.memory_space<vmem>>, %arg10: memref<1x256xf32, #tpu.memory_space<vmem>>, %arg11: memref<16x256xf32, #tpu.memory_space<vmem>>) attributes {dimension_semantics = [#tpu.dimension_semantics<arbitrary>], iteration_bounds = array<i64: 1>, scalar_prefetch = 0 : i64, scratch_operands = 0 : i64, tpu.core_type = #tpu.core_type<tc>, window_params = [{pipeline_mode = #tpu.pipeline_mode<synchronous>, transform_indices = @transform_0, window_bounds = array<i64: 16, 40>}, {pipeline_mode = #tpu.pipeline_mode<synchronous>, transform_indices = @transform_1, window_bounds = array<i64: 40, 256>}, {pipeline_mode = #tpu.pipeline_mode<synchronous>, transform_indices = @transform_2, window_bounds = array<i64: 1, 256>}, {pipeline_mode = #tpu.pipeline_mode<synchronous>, transform_indices = @transform_3, window_bounds = array<i64: 1, 32>}, {pipeline_mode = #tpu.pipeline_mode<synchronous>, transform_indices = @transform_4, window_bounds = array<i64: 1, 32>}, {pipeline_mode = #tpu.pipeline_mode<synchronous>, transform_indices = @transform_5, window_bounds = array<i64: 256, 32>}, {pipeline_mode = #tpu.pipeline_mode<synchronous>, transform_indices = @transform_6, window_bounds = array<i64: 32, 256>}, {pipeline_mode = #tpu.pipeline_mode<synchronous>, transform_indices = @transform_7, window_bounds = array<i64: 256, 256>}, {pipeline_mode = #tpu.pipeline_mode<synchronous>, transform_indices = @transform_8, window_bounds = array<i64: 16, 16>}, {pipeline_mode = #tpu.pipeline_mode<synchronous>, transform_indices = @transform_9, window_bounds = array<i64: 1, 256>}, {pipeline_mode = #tpu.pipeline_mode<synchronous>, transform_indices = @transform_10, window_bounds = array<i64: 16, 256>}]} {
    %c0 = arith.constant 0 : index
    %c0_0 = arith.constant 0 : index
    %0 = vector.load %arg1[%c0, %c0_0] : memref<16x40xbf16, #tpu.memory_space<vmem>>, vector<16x40xbf16>
    %c0_1 = arith.constant 0 : index
    %c0_2 = arith.constant 0 : index
    %1 = vector.load %arg2[%c0_1, %c0_2] : memref<40x256xbf16, #tpu.memory_space<vmem>>, vector<40x256xbf16>
    %cst = arith.constant dense<0.000000e+00> : vector<16x256xf32>
    %2 = tpu.matmul %0, %1, %cst {dimension_numbers = #tpu.dot_dimension_numbers<[1], [0], [0], [1], [0, 0, 1, 1], [], []>} : vector<16x40xbf16>, vector<40x256xbf16>, vector<16x256xf32> -> vector<16x256xf32>
    %c0_3 = arith.constant 0 : index
    %c0_4 = arith.constant 0 : index
    %3 = vector.load %arg3[%c0_3, %c0_4] : memref<1x256xf32, #tpu.memory_space<vmem>>, vector<1x256xf32>
    %4 = vector.broadcast %3 : vector<1x256xf32> to vector<16x256xf32>
    %5 = arith.addf %2, %4 : vector<16x256xf32>
    %c0_5 = arith.constant 0 : index
    %c0_6 = arith.constant 0 : index
    %6 = vector.load %arg6[%c0_5, %c0_6] : memref<256x32xf32, #tpu.memory_space<vmem>>, vector<256x32xf32>
    %cst_7 = arith.constant dense<0.000000e+00> : vector<16x32xf32>
    %7 = tpu.matmul %5, %6, %cst_7 {dimension_numbers = #tpu.dot_dimension_numbers<[1], [0], [0], [1], [0, 0, 1, 1], [], []>} : vector<16x256xf32>, vector<256x32xf32>, vector<16x32xf32> -> vector<16x32xf32>
    %cst_8 = arith.constant 1.250000e-01 : f32
    %8 = vector.broadcast %cst_8 : f32 to vector<16x32xf32>
    %9 = arith.mulf %7, %8 : vector<16x32xf32>
    %10 = arith.mulf %5, %5 : vector<16x256xf32>
    %cst_9 = arith.constant dense<0.000000e+00> : vector<16x32xf32>
    %11 = tpu.matmul %10, %6, %cst_9 {dimension_numbers = #tpu.dot_dimension_numbers<[1], [0], [0], [1], [0, 0, 1, 1], [], []>} : vector<16x256xf32>, vector<256x32xf32>, vector<16x32xf32> -> vector<16x32xf32>
    %cst_10 = arith.constant 1.250000e-01 : f32
    %12 = vector.broadcast %cst_10 : f32 to vector<16x32xf32>
    %13 = arith.mulf %11, %12 : vector<16x32xf32>
    %14 = arith.mulf %9, %9 : vector<16x32xf32>
    %15 = arith.subf %13, %14 : vector<16x32xf32>
    %c0_11 = arith.constant 0 : index
    %c0_12 = arith.constant 0 : index
    %16 = vector.load %arg4[%c0_11, %c0_12] : memref<1x32xf32, #tpu.memory_space<vmem>>, vector<1x32xf32>
    %cst_13 = arith.constant 9.99999974E-6 : f32
    %17 = vector.broadcast %cst_13 : f32 to vector<16x32xf32>
    %18 = arith.addf %15, %17 : vector<16x32xf32>
    %19 = math.rsqrt %18 : vector<16x32xf32>
    %20 = vector.broadcast %16 : vector<1x32xf32> to vector<16x32xf32>
    %21 = arith.mulf %20, %19 : vector<16x32xf32>
    %c0_14 = arith.constant 0 : index
    %c0_15 = arith.constant 0 : index
    %22 = vector.load %arg5[%c0_14, %c0_15] : memref<1x32xf32, #tpu.memory_space<vmem>>, vector<1x32xf32>
    %23 = arith.mulf %9, %21 : vector<16x32xf32>
    %24 = vector.broadcast %22 : vector<1x32xf32> to vector<16x32xf32>
    %25 = arith.subf %24, %23 : vector<16x32xf32>
    %c0_16 = arith.constant 0 : index
    %c0_17 = arith.constant 0 : index
    %26 = vector.load %arg7[%c0_16, %c0_17] : memref<32x256xf32, #tpu.memory_space<vmem>>, vector<32x256xf32>
    %cst_18 = arith.constant dense<0.000000e+00> : vector<16x256xf32>
    %27 = tpu.matmul %21, %26, %cst_18 {dimension_numbers = #tpu.dot_dimension_numbers<[1], [0], [0], [1], [0, 0, 1, 1], [], []>} : vector<16x32xf32>, vector<32x256xf32>, vector<16x256xf32> -> vector<16x256xf32>
    %cst_19 = arith.constant dense<0.000000e+00> : vector<16x256xf32>
    %28 = tpu.matmul %25, %26, %cst_19 {dimension_numbers = #tpu.dot_dimension_numbers<[1], [0], [0], [1], [0, 0, 1, 1], [], []>} : vector<16x32xf32>, vector<32x256xf32>, vector<16x256xf32> -> vector<16x256xf32>
    %29 = arith.mulf %5, %27 : vector<16x256xf32>
    %30 = arith.addf %29, %28 : vector<16x256xf32>
    %cst_20 = arith.constant 0.000000e+00 : f32
    %31 = vector.broadcast %cst_20 : f32 to vector<16x256xf32>
    %32 = arith.maximumf %30, %31 : vector<16x256xf32>
    %33 = arith.truncf %32 : vector<16x256xf32> to vector<16x256xbf16>
    %c0_21 = arith.constant 0 : index
    %c0_22 = arith.constant 0 : index
    %34 = vector.load %arg8[%c0_21, %c0_22] : memref<256x256xbf16, #tpu.memory_space<vmem>>, vector<256x256xbf16>
    %cst_23 = arith.constant dense<0.000000e+00> : vector<16x256xf32>
    %35 = tpu.matmul %33, %34, %cst_23 {dimension_numbers = #tpu.dot_dimension_numbers<[1], [0], [0], [1], [0, 0, 1, 1], [], []>} : vector<16x256xbf16>, vector<256x256xbf16>, vector<16x256xf32> -> vector<16x256xf32>
    %c0_24 = arith.constant 0 : index
    %c0_25 = arith.constant 0 : index
    %36 = vector.load %arg9[%c0_24, %c0_25] : memref<16x16xbf16, #tpu.memory_space<vmem>>, vector<16x16xbf16>
    %37 = arith.truncf %35 : vector<16x256xf32> to vector<16x256xbf16>
    %cst_26 = arith.constant dense<0.000000e+00> : vector<16x256xf32>
    %38 = tpu.matmul %36, %37, %cst_26 {dimension_numbers = #tpu.dot_dimension_numbers<[1], [0], [0], [1], [0, 0, 1, 1], [], []>} : vector<16x16xbf16>, vector<16x256xbf16>, vector<16x256xf32> -> vector<16x256xf32>
    %c0_27 = arith.constant 0 : index
    %c0_28 = arith.constant 0 : index
    %39 = vector.load %arg10[%c0_27, %c0_28] : memref<1x256xf32, #tpu.memory_space<vmem>>, vector<1x256xf32>
    %40 = vector.broadcast %39 : vector<1x256xf32> to vector<16x256xf32>
    %41 = arith.addf %38, %40 : vector<16x256xf32>
    %cst_29 = arith.constant 0.000000e+00 : f32
    %42 = vector.broadcast %cst_29 : f32 to vector<16x256xf32>
    %43 = arith.maximumf %41, %42 : vector<16x256xf32>
    %c0_30 = arith.constant 0 : index
    %c0_31 = arith.constant 0 : index
    %44 = vector.load %arg11[%c0_30, %c0_31] : memref<16x256xf32, #tpu.memory_space<vmem>>, vector<16x256xf32>
    tpu.vector_store %arg11[%c0_30, %c0_31], %43 {strides = array<i32>} : memref<16x256xf32, #tpu.memory_space<vmem>>, vector<16x256xf32>,
    return
  }
  func.func @transform_0(%arg0: i32) -> (i32, i32) {
    %c0_i32 = arith.constant 0 : i32
    %c0_i32_0 = arith.constant 0 : i32
    %c0_i32_1 = arith.constant 0 : i32
    return %c0_i32, %c0_i32_0 : i32, i32
  }
  func.func @transform_1(%arg0: i32) -> (i32, i32) {
    %c0_i32 = arith.constant 0 : i32
    %c0_i32_0 = arith.constant 0 : i32
    %c0_i32_1 = arith.constant 0 : i32
    return %c0_i32, %c0_i32_0 : i32, i32
  }
  func.func @transform_2(%arg0: i32) -> (i32, i32) {
    %c0_i32 = arith.constant 0 : i32
    %c0_i32_0 = arith.constant 0 : i32
    %c0_i32_1 = arith.constant 0 : i32
    return %c0_i32, %c0_i32_0 : i32, i32
  }
  func.func @transform_3(%arg0: i32) -> (i32, i32) {
    %c0_i32 = arith.constant 0 : i32
    %c0_i32_0 = arith.constant 0 : i32
    %c0_i32_1 = arith.constant 0 : i32
    return %c0_i32, %c0_i32_0 : i32, i32
  }
  func.func @transform_4(%arg0: i32) -> (i32, i32) {
    %c0_i32 = arith.constant 0 : i32
    %c0_i32_0 = arith.constant 0 : i32
    %c0_i32_1 = arith.constant 0 : i32
    return %c0_i32, %c0_i32_0 : i32, i32
  }
  func.func @transform_5(%arg0: i32) -> (i32, i32) {
    %c0_i32 = arith.constant 0 : i32
    %c0_i32_0 = arith.constant 0 : i32
    %c0_i32_1 = arith.constant 0 : i32
    return %c0_i32, %c0_i32_0 : i32, i32
  }
  func.func @transform_6(%arg0: i32) -> (i32, i32) {
    %c0_i32 = arith.constant 0 : i32
    %c0_i32_0 = arith.constant 0 : i32
    %c0_i32_1 = arith.constant 0 : i32
    return %c0_i32, %c0_i32_0 : i32, i32
  }
  func.func @transform_7(%arg0: i32) -> (i32, i32) {
    %c0_i32 = arith.constant 0 : i32
    %c0_i32_0 = arith.constant 0 : i32
    %c0_i32_1 = arith.constant 0 : i32
    return %c0_i32, %c0_i32_0 : i32, i32
  }
  func.func @transform_8(%arg0: i32) -> (i32, i32) {
    %c0_i32 = arith.constant 0 : i32
    %c0_i32_0 = arith.constant 0 : i32
    %c0_i32_1 = arith.constant 0 : i32
    return %c0_i32, %c0_i32_0 : i32, i32
  }
  func.func @transform_9(%arg0: i32) -> (i32, i32) {
    %c0_i32 = arith.constant 0 : i32
    %c0_i32_0 = arith.constant 0 : i32
    %c0_i32_1 = arith.constant 0 : i32
    return %c0_i32, %c0_i32_0 : i32, i32
  }
  func.func @transform_10(%arg0: i32) -> (i32, i32) {
    %c0_i32 = arith.constant 0 : i32
    %c0_i32_0 = arith.constant 0 : i32
    %c0_i32_1 = arith.constant 0 : i32
    return %c0_i32, %c0_i32_0 : i32, i32
  }
}

</mosaic_0001>

<llo_original>
// kernel: tile.39
$region0: #{tile.39}
  %s0 = inlined_call_operand.vmem [shape: f32[32,8,32], index: 0, kind: input, shape index: {}]
  %s1 = inlined_call_operand.vmem [shape: f32[32,256], index: 1, kind: output, shape index: {}]
  %v2 = vld [vmem:[%s0] ss:$4 sm:$0xff]
  %vm3 = vcmask 261120
  %4 = vst.msk [vmem:[%s1] ss:$8 sm:$0x3] %vm3, %v2
  %s5 = scalar_lea.vmem %s1, 4294967281
  %6 = vst.msk [vmem:[%s5] ss:$8 sm:$0xc] %vm3, %v2
  %s7 = scalar_lea.vmem %s1, 4294967266
  %8 = vst.msk [vmem:[%s7] ss:$8 sm:$0x30] %vm3, %v2
  %s9 = scalar_lea.vmem %s1, 4294967251
  %10 = vst.msk [vmem:[%s9] ss:$8 sm:$0xc0] %vm3, %v2
  %s11 = scalar_lea.vmem %s0, 32
  %v12 = vld [vmem:[%s11] ss:$4 sm:$0xff]
  %vm13 = vcmask 261120
  %s14 = scalar_lea.vmem %s1, 4
  %15 = vst.msk [vmem:[%s14] ss:$8 sm:$0x3] %vm13, %v12
  %s16 = scalar_lea.vmem %s1, 4294967285
  %17 = vst.msk [vmem:[%s16] ss:$8 sm:$0xc] %vm13, %v12
  %s18 = scalar_lea.vmem %s1, 4294967270
  %19 = vst.msk [vmem:[%s18] ss:$8 sm:$0x30] %vm13, %v12
  %s20 = scalar_lea.vmem %s1, 4294967255
  %21 = vst.msk [vmem:[%s20] ss:$8 sm:$0xc0] %vm13, %v12
  %s22 = scalar_lea.vmem %s0, 64
  %v23 = vld [vmem:[%s22] ss:$4 sm:$0xff]
  %vm24 = vcmask 261120
  %s25 = scalar_lea.vmem %s1, 16
  %26 = vst.msk [vmem:[%s25] ss:$8 sm:$0x3] %vm24, %v23
  %s27 = scalar_lea.vmem %s1, 1
  %28 = vst.msk [vmem:[%s27] ss:$8 sm:$0xc] %vm24, %v23
  %s29 = scalar_lea.vmem %s1, 4294967282
  %30 = vst.msk [vmem:[%s29] ss:$8 sm:$0x30] %vm24, %v23
  %s31 = scalar_lea.vmem %s1, 4294967267
  %32 = vst.msk [vmem:[%s31] ss:$8 sm:$0xc0] %vm24, %v23
  %s33 = scalar_lea.vmem %s0, 96
  %v34 = vld [vmem:[%s33] ss:$4 sm:$0xff]
  %vm35 = vcmask 261120
  %s36 = scalar_lea.vmem %s1, 20
  %37 = vst.msk [vmem:[%s36] ss:$8 sm:$0x3] %vm35, %v34
  %s38 = scalar_lea.vmem %s1, 5
  %39 = vst.msk [vmem:[%s38] ss:$8 sm:$0xc] %vm35, %v34
  %s40 = scalar_lea.vmem %s1, 4294967286
  %41 = vst.msk [vmem:[%s40] ss:$8 sm:$0x30] %vm35, %v34
  %s42 = scalar_lea.vmem %s1, 4294967271
  %43 = vst.msk [vmem:[%s42] ss:$8 sm:$0xc0] %vm35, %v34
  %s44 = scalar_lea.vmem %s0, 128
  %v45 = vld [vmem:[%s44] ss:$4 sm:$0xff]
  %vm46 = vcmask 261120
  %s47 = scalar_lea.vmem %s1, 32
  %48 = vst.msk [vmem:[%s47] ss:$8 sm:$0x3] %vm46, %v45
  %s49 = scalar_lea.vmem %s1, 17
  %50 = vst.msk [vmem:[%s49] ss:$8 sm:$0xc] %vm46, %v45
  %s51 = scalar_lea.vmem %s1, 2
  %52 = vst.msk [vmem:[%s51] ss:$8 sm:$0x30] %vm46, %v45
  %s53 = scalar_lea.vmem %s1, 4294967283
  %54 = vst.msk [vmem:[%s53] ss:$8 sm:$0xc0] %vm46, %v45
  %s55 = scalar_lea.vmem %s0, 160
  %v56 = vld [vmem:[%s55] ss:$4 sm:$0xff]
  %vm57 = vcmask 261120
  %s58 = scalar_lea.vmem %s1, 36
  %59 = vst.msk [vmem:[%s58] ss:$8 sm:$0x3] %vm57, %v56
  %s60 = scalar_lea.vmem %s1, 21
  %61 = vst.msk [vmem:[%s60] ss:$8 sm:$0xc] %vm57, %v56
  %s62 = scalar_lea.vmem %s1, 6
  %63 = vst.msk [vmem:[%s62] ss:$8 sm:$0x30] %vm57, %v56
  %s64 = scalar_lea.vmem %s1, 4294967287
  %65 = vst.msk [vmem:[%s64] ss:$8 sm:$0xc0] %vm57, %v56
  %s66 = scalar_lea.vmem %s0, 192
  %v67 = vld [vmem:[%s66] ss:$4 sm:$0xff]
  %vm68 = vcmask 261120
  %s69 = scalar_lea.vmem %s1, 48
  %70 = vst.msk [vmem:[%s69] ss:$8 sm:$0x3] %vm68, %v67
  %s71 = scalar_lea.vmem %s1, 33
  %72 = vst.msk [vmem:[%s71] ss:$8 sm:$0xc] %vm68, %v67
  %s73 = scalar_lea.vmem %s1, 18
  %74 = vst.msk [vmem:[%s73] ss:$8 sm:$0x30] %vm68, %v67
  %s75 = scalar_lea.vmem %s1, 3
  %76 = vst.msk [vmem:[%s75] ss:$8 sm:$0xc0] %vm68, %v67
  %s77 = scalar_lea.vmem %s0, 224
  %v78 = vld [vmem:[%s77] ss:$4 sm:$0xff]
  %vm79 = vcmask 261120
  %s80 = scalar_lea.vmem %s1, 52
  %81 = vst.msk [vmem:[%s80] ss:$8 sm:$0x3] %vm79, %v78
  %s82 = scalar_lea.vmem %s1, 37
  %83 = vst.msk [vmem:[%s82] ss:$8 sm:$0xc] %vm79, %v78
  %s84 = scalar_lea.vmem %s1, 22
  %85 = vst.msk [vmem:[%s84] ss:$8 sm:$0x30] %vm79, %v78
  %s86 = scalar_lea.vmem %s1, 7
  %87 = vst.msk [vmem:[%s86] ss:$8 sm:$0xc0] %vm79, %v78
  %s88 = scalar_lea.vmem %s0, 3
  %v89 = vld [vmem:[%s88] ss:$8 sm:$0xf]
  %s90 = scalar_lea.vmem %s0, 3
  %v91 = vld [vmem:[%s90] ss:$8 sm:$0xf0]
  %vm92 = vcmask 1047556
  %v93 = vsel %vm92, %v91, %v89
  %94 = vrot.lane.b32.xlu0 %v93, 96
  %v95 = vpop.permute.xlu0 %94
  %vm96 = vcmask 1048320
  %97 = vst.msk [vmem:[%s1] sm:$0xff] %vm96, %v95
  %s98 = scalar_lea.vmem %s0, 131
  %v99 = vld [vmem:[%s98] ss:$8 sm:$0xf]
  %s100 = scalar_lea.vmem %s0, 131
  %v101 = vld [vmem:[%s100] ss:$8 sm:$0xf0]
  %vm102 = vcmask 1047556
  %v103 = vsel %vm102, %v101, %v99
  %104 = vrot.lane.b32.xlu0 %v103, 96
  %v105 = vpop.permute.xlu0 %104
  %vm106 = vcmask 1048320
  %s107 = scalar_lea.vmem %s1, 32
  %108 = vst.msk [vmem:[%s107] sm:$0xff] %vm106, %v105
  %s109 = scalar_lea.vmem %s0, 7
  %v110 = vld [vmem:[%s109] ss:$8 sm:$0xf]
  %s111 = scalar_lea.vmem %s0, 7
  %v112 = vld [vmem:[%s111] ss:$8 sm:$0xf0]
  %vm113 = vcmask 1047556
  %v114 = vsel %vm113, %v112, %v110
  %115 = vrot.lane.b32.xlu0 %v114, 96
  %v116 = vpop.permute.xlu0 %115
  %vm117 = vcmask 1048320
  %s118 = scalar_lea.vmem %s1, 8
  %119 = vst.msk [vmem:[%s118] sm:$0xff] %vm117, %v116
  %s120 = scalar_lea.vmem %s0, 135
  %v121 = vld [vmem:[%s120] ss:$8 sm:$0xf]
  %s122 = scalar_lea.vmem %s0, 135
  %v123 = vld [vmem:[%s122] ss:$8 sm:$0xf0]
  %vm124 = vcmask 1047556
  %v125 = vsel %vm124, %v123, %v121
  %126 = vrot.lane.b32.xlu0 %v125, 96
  %v127 = vpop.permute.xlu0 %126
  %vm128 = vcmask 1048320
  %s129 = scalar_lea.vmem %s1, 40
  %130 = vst.msk [vmem:[%s129] sm:$0xff] %vm128, %v127
  %s131 = scalar_lea.vmem %s0, 67
  %v132 = vld [vmem:[%s131] ss:$8 sm:$0xf]
  %s133 = scalar_lea.vmem %s0, 67
  %v134 = vld [vmem:[%s133] ss:$8 sm:$0xf0]
  %vm135 = vcmask 1047556
  %v136 = vsel %vm135, %v134, %v132
  %137 = vrot.lane.b32.xlu0 %v136, 96
  %v138 = vpop.permute.xlu0 %137
  %vm139 = vcmask 1048320
  %s140 = scalar_lea.vmem %s1, 16
  %141 = vst.msk [vmem:[%s140] sm:$0xff] %vm139, %v138
  %s142 = scalar_lea.vmem %s0, 195
  %v143 = vld [vmem:[%s142] ss:$8 sm:$0xf]
  %s144 = scalar_lea.vmem %s0, 195
  %v145 = vld [vmem:[%s144] ss:$8 sm:$0xf0]
  %vm146 = vcmask 1047556
  %v147 = vsel %vm146, %v145, %v143
  %148 = vrot.lane.b32.xlu0 %v147, 96
  %v149 = vpop.permute.xlu0 %148
  %vm150 = vcmask 1048320
  %s151 = scalar_lea.vmem %s1, 48
  %152 = vst.msk [vmem:[%s151] sm:$0xff] %vm150, %v149
  %s153 = scalar_lea.vmem %s0, 71
  %v154 = vld [vmem:[%s153] ss:$8 sm:$0xf]
  %s155 = scalar_lea.vmem %s0, 71
  %v156 = vld [vmem:[%s155] ss:$8 sm:$0xf0]
  %vm157 = vcmask 1047556
  %v158 = vsel %vm157, %v156, %v154
  %159 = vrot.lane.b32.xlu0 %v158, 96
  %v160 = vpop.permute.xlu0 %159
  %vm161 = vcmask 1048320
  %s162 = scalar_lea.vmem %s1, 24
  %163 = vst.msk [vmem:[%s162] sm:$0xff] %vm161, %v160
  %s164 = scalar_lea.vmem %s0, 199
  %v165 = vld [vmem:[%s164] ss:$8 sm:$0xf]
  %s166 = scalar_lea.vmem %s0, 199
  %v167 = vld [vmem:[%s166] ss:$8 sm:$0xf0]
  %vm168 = vcmask 1047556
  %v169 = vsel %vm168, %v167, %v165
  %170 = vrot.lane.b32.xlu0 %v169, 96
  %v171 = vpop.permute.xlu0 %170
  %vm172 = vcmask 1048320
  %s173 = scalar_lea.vmem %s1, 56
  %174 = vst.msk [vmem:[%s173] sm:$0xff] %vm172, %v171
  %s175 = scalar_lea.vmem %s0, 2
  %v176 = vld [vmem:[%s175] ss:$8 sm:$0xf]
  %s177 = scalar_lea.vmem %s0, 2
  %v178 = vld [vmem:[%s177] ss:$8 sm:$0xf0]
  %vm179 = vcmask 1047556
  %v180 = vsel %vm179, %v178, %v176
  %181 = vrot.lane.b32.xlu0 %v180, 64
  %v182 = vpop.permute.xlu0 %181
  %vm183 = vcmask 785920
  %184 = vst.msk [vmem:[%s1] sm:$0xff] %vm183, %v182
  %s185 = scalar_lea.vmem %s0, 130
  %v186 = vld [vmem:[%s185] ss:$8 sm:$0xf]
  %s187 = scalar_lea.vmem %s0, 130
  %v188 = vld [vmem:[%s187] ss:$8 sm:$0xf0]
  %vm189 = vcmask 1047556
  %v190 = vsel %vm189, %v188, %v186
  %191 = vrot.lane.b32.xlu0 %v190, 64
  %v192 = vpop.permute.xlu0 %191
  %vm193 = vcmask 785920
  %s194 = scalar_lea.vmem %s1, 32
  %195 = vst.msk [vmem:[%s194] sm:$0xff] %vm193, %v192
  %s196 = scalar_lea.vmem %s0, 6
  %v197 = vld [vmem:[%s196] ss:$8 sm:$0xf]
  %s198 = scalar_lea.vmem %s0, 6
  %v199 = vld [vmem:[%s198] ss:$8 sm:$0xf0]
  %vm200 = vcmask 1047556
  %v201 = vsel %vm200, %v199, %v197
  %202 = vrot.lane.b32.xlu0 %v201, 64
  %v203 = vpop.permute.xlu0 %202
  %vm204 = vcmask 785920
  %s205 = scalar_lea.vmem %s1, 8
  %206 = vst.msk [vmem:[%s205] sm:$0xff] %vm204, %v203
  %s207 = scalar_lea.vmem %s0, 134
  %v208 = vld [vmem:[%s207] ss:$8 sm:$0xf]
  %s209 = scalar_lea.vmem %s0, 134
  %v210 = vld [vmem:[%s209] ss:$8 sm:$0xf0]
  %vm211 = vcmask 1047556
  %v212 = vsel %vm211, %v210, %v208
  %213 = vrot.lane.b32.xlu0 %v212, 64
  %v214 = vpop.permute.xlu0 %213
  %vm215 = vcmask 785920
  %s216 = scalar_lea.vmem %s1, 40
  %217 = vst.msk [vmem:[%s216] sm:$0xff] %vm215, %v214
  %s218 = scalar_lea.vmem %s0, 66
  %v219 = vld [vmem:[%s218] ss:$8 sm:$0xf]
  %s220 = scalar_lea.vmem %s0, 66
  %v221 = vld [vmem:[%s220] ss:$8 sm:$0xf0]
  %vm222 = vcmask 1047556
  %v223 = vsel %vm222, %v221, %v219
  %224 = vrot.lane.b32.xlu0 %v223, 64
  %v225 = vpop.permute.xlu0 %224
  %vm226 = vcmask 785920
  %s227 = scalar_lea.vmem %s1, 16
  %228 = vst.msk [vmem:[%s227] sm:$0xff] %vm226, %v225
  %s229 = scalar_lea.vmem %s0, 194
  %v230 = vld [vmem:[%s229] ss:$8 sm:$0xf]
  %s231 = scalar_lea.vmem %s0, 194
  %v232 = vld [vmem:[%s231] ss:$8 sm:$0xf0]
  %vm233 = vcmask 1047556
  %v234 = vsel %vm233, %v232, %v230
  %235 = vrot.lane.b32.xlu0 %v234, 64
  %v236 = vpop.permute.xlu0 %235
  %vm237 = vcmask 785920
  %s238 = scalar_lea.vmem %s1, 48
  %239 = vst.msk [vmem:[%s238] sm:$0xff] %vm237, %v236
  %s240 = scalar_lea.vmem %s0, 70
  %v241 = vld [vmem:[%s240] ss:$8 sm:$0xf]
  %s242 = scalar_lea.vmem %s0, 70
  %v243 = vld [vmem:[%s242] ss:$8 sm:$0xf0]
  %vm244 = vcmask 1047556
  %v245 = vsel %vm244, %v243, %v241
  %246 = vrot.lane.b32.xlu0 %v245, 64
  %v247 = vpop.permute.xlu0 %246
  %vm248 = vcmask 785920
  %s249 = scalar_lea.vmem %s1, 24
  %250 = vst.msk [vmem:[%s249] sm:$0xff] %vm248, %v247
  %s251 = scalar_lea.vmem %s0, 198
  %v252 = vld [vmem:[%s251] ss:$8 sm:$0xf]
  %s253 = scalar_lea.vmem %s0, 198
  %v254 = vld [vmem:[%s253] ss:$8 sm:$0xf0]
  %vm255 = vcmask 1047556
  %v256 = vsel %vm255, %v254, %v252
  %257 = vrot.lane.b32.xlu0 %v256, 64
  %v258 = vpop.permute.xlu0 %257
  %vm259 = vcmask 785920
  %s260 = scalar_lea.vmem %s1, 56
  %261 = vst.msk [vmem:[%s260] sm:$0xff] %vm259, %v258
  %s262 = scalar_lea.vmem %s0, 1
  %v263 = vld [vmem:[%s262] ss:$8 sm:$0xf]
  %s264 = scalar_lea.vmem %s0, 1
  %v265 = vld [vmem:[%s264] ss:$8 sm:$0xf0]
  %vm266 = vcmask 1047556
  %v267 = vsel %vm266, %v265, %v263
  %268 = vrot.lane.b32.xlu0 %v267, 32
  %v269 = vpop.permute.xlu0 %268
  %vm270 = vcmask 523520
  %271 = vst.msk [vmem:[%s1] sm:$0xff] %vm270, %v269
  %s272 = scalar_lea.vmem %s0, 129
  %v273 = vld [vmem:[%s272] ss:$8 sm:$0xf]
  %s274 = scalar_lea.vmem %s0, 129
  %v275 = vld [vmem:[%s274] ss:$8 sm:$0xf0]
  %vm276 = vcmask 1047556
  %v277 = vsel %vm276, %v275, %v273
  %278 = vrot.lane.b32.xlu0 %v277, 32
  %v279 = vpop.permute.xlu0 %278
  %vm280 = vcmask 523520
  %s281 = scalar_lea.vmem %s1, 32
  %282 = vst.msk [vmem:[%s281] sm:$0xff] %vm280, %v279
  %s283 = scalar_lea.vmem %s0, 5
  %v284 = vld [vmem:[%s283] ss:$8 sm:$0xf]
  %s285 = scalar_lea.vmem %s0, 5
  %v286 = vld [vmem:[%s285] ss:$8 sm:$0xf0]
  %vm287 = vcmask 1047556
  %v288 = vsel %vm287, %v286, %v284
  %289 = vrot.lane.b32.xlu0 %v288, 32
  %v290 = vpop.permute.xlu0 %289
  %vm291 = vcmask 523520
  %s292 = scalar_lea.vmem %s1, 8
  %293 = vst.msk [vmem:[%s292] sm:$0xff] %vm291, %v290
  %s294 = scalar_lea.vmem %s0, 133
  %v295 = vld [vmem:[%s294] ss:$8 sm:$0xf]
  %s296 = scalar_lea.vmem %s0, 133
  %v297 = vld [vmem:[%s296] ss:$8 sm:$0xf0]
  %vm298 = vcmask 1047556
  %v299 = vsel %vm298, %v297, %v295
  %300 = vrot.lane.b32.xlu0 %v299, 32
  %v301 = vpop.permute.xlu0 %300
  %vm302 = vcmask 523520
  %s303 = scalar_lea.vmem %s1, 40
  %304 = vst.msk [vmem:[%s303] sm:$0xff] %vm302, %v301
  %s305 = scalar_lea.vmem %s0, 65
  %v306 = vld [vmem:[%s305] ss:$8 sm:$0xf]
  %s307 = scalar_lea.vmem %s0, 65
  %v308 = vld [vmem:[%s307] ss:$8 sm:$0xf0]
  %vm309 = vcmask 1047556
  %v310 = vsel %vm309, %v308, %v306
  %311 = vrot.lane.b32.xlu0 %v310, 32
  %v312 = vpop.permute.xlu0 %311
  %vm313 = vcmask 523520
  %s314 = scalar_lea.vmem %s1, 16
  %315 = vst.msk [vmem:[%s314] sm:$0xff] %vm313, %v312
  %s316 = scalar_lea.vmem %s0, 193
  %v317 = vld [vmem:[%s316] ss:$8 sm:$0xf]
  %s318 = scalar_lea.vmem %s0, 193
  %v319 = vld [vmem:[%s318] ss:$8 sm:$0xf0]
  %vm320 = vcmask 1047556
  %v321 = vsel %vm320, %v319, %v317
  %322 = vrot.lane.b32.xlu0 %v321, 32
  %v323 = vpop.permute.xlu0 %322
  %vm324 = vcmask 523520
  %s325 = scalar_lea.vmem %s1, 48
  %326 = vst.msk [vmem:[%s325] sm:$0xff] %vm324, %v323
  %s327 = scalar_lea.vmem %s0, 69
  %v328 = vld [vmem:[%s327] ss:$8 sm:$0xf]
  %s329 = scalar_lea.vmem %s0, 69
  %v330 = vld [vmem:[%s329] ss:$8 sm:$0xf0]
  %vm331 = vcmask 1047556
  %v332 = vsel %vm331, %v330, %v328
  %333 = vrot.lane.b32.xlu0 %v332, 32
  %v334 = vpop.permute.xlu0 %333
  %vm335 = vcmask 523520
  %s336 = scalar_lea.vmem %s1, 24
  %337 = vst.msk [vmem:[%s336] sm:$0xff] %vm335, %v334
  %s338 = scalar_lea.vmem %s0, 197
  %v339 = vld [vmem:[%s338] ss:$8 sm:$0xf]
  %s340 = scalar_lea.vmem %s0, 197
  %v341 = vld [vmem:[%s340] ss:$8 sm:$0xf0]
  %vm342 = vcmask 1047556
  %v343 = vsel %vm342, %v341, %v339
  %344 = vrot.lane.b32.xlu0 %v343, 32
  %v345 = vpop.permute.xlu0 %344
  %vm346 = vcmask 523520
  %s347 = scalar_lea.vmem %s1, 56
  %348 = vst.msk [vmem:[%s347] sm:$0xff] %vm346, %v345

// kernel: tile.23
$region0: #{tile.23}
  #allocation0 [shape = 's32[1]{0}', space=sflag, size = 0x4, scoped, tag = 'scoped memory for tile.23']
  %s0 = inlined_call_operand.vmem [shape: f32[32], index: 0, kind: input, shape index: {}]
  %s1 = inlined_call_operand.vmem [shape: f32[8,32], index: 1, kind: output, shape index: {}]
  // Predicated region
  $region2: #{tile.23} parent=0 // pred_check
    _
  $region3: #{tile.23} parent=0 // pred_check_branch
    %3 = sbr.rel (0) target = $region5
  $region4: #{tile.23} parent=0 // pred_region
    _
  $region5: #{tile.23} parent=0 // pred_fallthru
    _
  %v4 = vld [vmem:[%s0] ss:$0 sm:$0xff]
  %5 = vst [vmem:[%s1] sm:$0xff] %v4

// kernel: tile.24
$region0: #{tile.24}
  %s0 = inlined_call_operand.vmem [shape: f32[8,32], index: 0, kind: input, shape index: {}]
  %s1 = inlined_call_operand.vmem [shape: f32[1,256], index: 1, kind: output, shape index: {}]
  $region1: #{tile.24} parent=0
    #allocation0 [shape = 'u8[8192]{0}', space=vmem, size = 0x2000, scoped, tag = 'scoped mem for output reshape']
    %s2 = smov 3
    %v3 = vld [vmem:[%s0] ss:$4 sm:%s2]
    %vm4 = vcmask 261120
    %5 = vst.msk [vmem:[#allocation0] ss:$8 sm:$0x3] %vm4, %v3
    %s6 = scalar_lea.vmem %s0, 3
    %s7 = smov 3
    %v8 = vld [vmem:[%s6] ss:$4 sm:%s7]
    %9 = vrot.lane.b32.xlu0 %v8, 96
    %v10 = vpop.permute.xlu0 %9
    %vm11 = vcmask 1048320
    %12 = vst.msk [vmem:[#allocation0] ss:$8 sm:$0x3] %vm11, %v10
    %s13 = scalar_lea.vmem %s0, 2
    %s14 = smov 3
    %v15 = vld [vmem:[%s13] ss:$4 sm:%s14]
    %16 = vrot.lane.b32.xlu0 %v15, 64
    %v17 = vpop.permute.xlu0 %16
    %vm18 = vcmask 785920
    %19 = vst.msk [vmem:[#allocation0] ss:$8 sm:$0x3] %vm18, %v17
    %s20 = scalar_lea.vmem %s0, 1
    %s21 = smov 3
    %v22 = vld [vmem:[%s20] ss:$4 sm:%s21]
    %23 = vrot.lane.b32.xlu0 %v22, 32
    %v24 = vpop.permute.xlu0 %23
    %vm25 = vcmask 523520
    %26 = vst.msk [vmem:[#allocation0] ss:$8 sm:$0x3] %vm25, %v24
    %s28 = sshll.u32 1, 1
    %s29 = ssub.s32 %s28, 1
    %v31 = vld [vmem:[#allocation0] sm:%s29]
    %s32 = sshll.u32 1, 1
    %s33 = ssub.s32 %s32, 1
    %34 = vst [vmem:[%s1] sm:%s33] %v31
    %s35 = scalar_lea.vmem [#allocation0], 8
    %v36 = vld [vmem:[%s35] sm:%s29]
    %s37 = sshll.u32 1, 1
    %s38 = ssub.s32 %s37, 1
    %s39 = scalar_lea.vmem %s1, 1
    %40 = vst [vmem:[%s39] sm:%s38] %v36

// kernel: stgcn_forward.1
$region0: #{stgcn_forward.1}
  #allocation0 [shape = 'u32[]', space=smem, size = 0x4, offset = 0x4, fixed_abs, tag = 'smem constant byte address 0x4 - core index']
  #allocation1 [shape = 'u32[144,128]{1,0:T(1,128)}', space=vmem, size = 0x12000, scoped, tag = 'internal scratch']
  %s0 = inlined_call_operand.vmem [shape: bf16[16,40], index: 0, kind: input, shape index: {}]
  %s1 = inlined_call_operand.vmem [shape: bf16[40,256], index: 1, kind: input, shape index: {}]
  %s2 = inlined_call_operand.vmem [shape: f32[1,256], index: 2, kind: input, shape index: {}]
  %s3 = inlined_call_operand.vmem [shape: f32[1,32], index: 3, kind: input, shape index: {}]
  %s4 = inlined_call_operand.vmem [shape: f32[1,32], index: 4, kind: input, shape index: {}]
  %s5 = inlined_call_operand.vmem [shape: f32[256,32], index: 5, kind: input, shape index: {}]
  %s6 = inlined_call_operand.vmem [shape: f32[32,256], index: 6, kind: input, shape index: {}]
  %s7 = inlined_call_operand.vmem [shape: bf16[256,256], index: 7, kind: input, shape index: {}]
  %s8 = inlined_call_operand.vmem [shape: bf16[16,16], index: 8, kind: input, shape index: {}]
  %s9 = inlined_call_operand.vmem [shape: f32[1,256], index: 9, kind: input, shape index: {}]
  %s10 = inlined_call_operand.vmem [shape: f32[16,256], index: 10, kind: output, shape index: {}]
  %s11 = sld [smem:[#allocation0]]
  $region50: #{stgcn_forward.1} parent=0
    _
  %s13 = ssub.s32 1, %s11
  %s14 = scalar_select 0, %s13, %s11
  // Predicated region
  $region2: #{stgcn_forward.1} parent=0 // pred_check
    _
  $region3: #{stgcn_forward.1} parent=0 // pred_check_branch
    %16 = sbr.rel (0) target = $region5
  $region4: #{stgcn_forward.1} parent=0 // pred_region
    _
  $region5: #{stgcn_forward.1} parent=0 // pred_fallthru
    _
  // Predicated region
  $region6: #{stgcn_forward.1} parent=0 // pred_check
    _
  $region7: #{stgcn_forward.1} parent=0 // pred_check_branch
    %18 = sbr.rel (0) target = $region9
  $region8: #{stgcn_forward.1} parent=0 // pred_region
    _
  $region9: #{stgcn_forward.1} parent=0 // pred_fallthru
    _
  // Predicated region
  $region10: #{stgcn_forward.1} parent=0 // pred_check
    _
  $region11: #{stgcn_forward.1} parent=0 // pred_check_branch
    %20 = sbr.rel (0) target = $region13
  $region12: #{stgcn_forward.1} parent=0 // pred_region
    _
  $region13: #{stgcn_forward.1} parent=0 // pred_fallthru
    _
  // Predicated region
  $region14: #{stgcn_forward.1} parent=0 // pred_check
    _
  $region15: #{stgcn_forward.1} parent=0 // pred_check_branch
    %22 = sbr.rel (0) target = $region17
  $region16: #{stgcn_forward.1} parent=0 // pred_region
    _
  $region17: #{stgcn_forward.1} parent=0 // pred_fallthru
    _
  // Predicated region
  $region18: #{stgcn_forward.1} parent=0 // pred_check
    _
  $region19: #{stgcn_forward.1} parent=0 // pred_check_branch
    %24 = sbr.rel (0) target = $region21
  $region20: #{stgcn_forward.1} parent=0 // pred_region
    _
  $region21: #{stgcn_forward.1} parent=0 // pred_fallthru
    _
  // Predicated region
  $region22: #{stgcn_forward.1} parent=0 // pred_check
    _
  $region23: #{stgcn_forward.1} parent=0 // pred_check_branch
    %26 = sbr.rel (0) target = $region25
  $region24: #{stgcn_forward.1} parent=0 // pred_region
    _
  $region25: #{stgcn_forward.1} parent=0 // pred_fallthru
    _
  // Predicated region
  $region26: #{stgcn_forward.1} parent=0 // pred_check
    _
  $region27: #{stgcn_forward.1} parent=0 // pred_check_branch
    %28 = sbr.rel (0) target = $region29
  $region28: #{stgcn_forward.1} parent=0 // pred_region
    _
  $region29: #{stgcn_forward.1} parent=0 // pred_fallthru
    _
  // Predicated region
  $region30: #{stgcn_forward.1} parent=0 // pred_check
    _
  $region31: #{stgcn_forward.1} parent=0 // pred_check_branch
    %30 = sbr.rel (0) target = $region33
  $region32: #{stgcn_forward.1} parent=0 // pred_region
    _
  $region33: #{stgcn_forward.1} parent=0 // pred_fallthru
    _
  // Predicated region
  $region34: #{stgcn_forward.1} parent=0 // pred_check
    _
  $region35: #{stgcn_forward.1} parent=0 // pred_check_branch
    %32 = sbr.rel (0) target = $region37
  $region36: #{stgcn_forward.1} parent=0 // pred_region
    _
  $region37: #{stgcn_forward.1} parent=0 // pred_fallthru
    _
  // Predicated region
  $region38: #{stgcn_forward.1} parent=0 // pred_check
    _
  $region39: #{stgcn_forward.1} parent=0 // pred_check_branch
    %34 = sbr.rel (0) target = $region41
  $region40: #{stgcn_forward.1} parent=0 // pred_region
    _
  $region41: #{stgcn_forward.1} parent=0 // pred_fallthru
    _
  %v36 = vld [vmem:[%s0] sm:$0xf]
  %v37 = vld [vmem:[%s0 + $0x4] sm:$0xf]
  %v38 = vld [vmem:[%s1] sm:$0xff]
  %v39 = vld [vmem:[%s1 + $0x8] sm:$0xff]
  %v40 = vld [vmem:[%s1 + $0x10] sm:$0xff]
  %v41 = vld [vmem:[%s1 + $0x18] sm:$0xff]
  %v42 = vld [vmem:[%s1 + $0x20] sm:$0xff]
  %v43 = vld [vmem:[%s2] sm:$0x3]
  %v45 = vlaneseq
  %v46 = vshrl.u32 %v45, 7
  %v47 = vsub.s32 0, %v46
  %v48 = vrot.slane %v43, %v47
  %v49 = vlaneseq
  %v50 = vshrl.u32 %v49, 7
  %v51 = vsub.s32 1, %v50
  %v52 = vrot.slane %v43, %v51
  %v57 = vunpack.c.l.b16 %v36
  %v58 = vunpack.c.l.b16 %v37
  %v59 = vpack.c.b16 %v58, %v57
  %v65 = vunpack.c.l.b16 %v38
  %v66 = vunpack.c.h.b16 %v38
  %v67 = vunpack.c.l.b16 %v39
  %v68 = vunpack.c.h.b16 %v39
  %v69 = vunpack.c.l.b16 %v40
  %v70 = vunpack.c.h.b16 %v40
  %v71 = vunpack.c.l.b16 %v41
  %v72 = vunpack.c.h.b16 %v41
  %v73 = vunpack.c.l.b16 %v42
  %v74 = vunpack.c.h.b16 %v42
  %v75 = vpack.c.b16 %v67, %v65
  %v76 = vpack.c.b16 %v68, %v66
  %v77 = vpack.c.b16 %v71, %v69
  %v78 = vpack.c.b16 %v72, %v70
  %v79 = vpack.c.b16 %v73, %v73
  %v80 = vpack.c.b16 %v74, %v74
  %vm85 = vcmask 326656
  %v87 = vsel %vm85, %v59, 0
  %vm89 = vcmask 1043456
  %v91 = vsel %vm89, %v79, 0
  %v94 = vsel %vm89, %v80, 0
  %96 = vmatprep.subr.bf16.mxu0 0
  %97 = vmatpush1.bf16.msra.mxu0 0
  %98 = vmatprep.subr.bf16.mxu0 0
  %99 = vmatpush1.bf16.msra.mxu0 0
  %100 = vmatprep.subr.bf16.mxu0 0
  %101 = vmatpush1.bf16.msra.mxu0 0
  %102 = vmatprep.subr.bf16.mxu0 0
  %103 = vmatpush1.bf16.msra.mxu0 0
  %104 = vmatprep.subr.bf16.mxu0 0
  %105 = vmatpush1.bf16.msra.mxu0 0
  %106 = vmatprep.subr.bf16.mxu0 %v94
  %107 = vmatpush1.bf16.msra.mxu0 %v91
  %108 = vmatprep.subr.bf16.mxu0 %v78
  %109 = vmatpush1.bf16.msra.mxu0 %v77
  %110 = vmatprep.subr.bf16.mxu0 %v76
  %111 = vmatpush1.bf16.msra.mxu0 %v75
  %112 = vmatprep.subr.bf16.mxu0 0
  %113 = vmatpush2.bf16.msra.mxu0 0
  %114 = vmatprep.subr.bf16.mxu0 0
  %115 = vmatpush2.bf16.msra.mxu0 0
  %116 = vmatprep.subr.bf16.mxu0 0
  %117 = vmatpush2.bf16.msra.mxu0 0
  %118 = vmatprep.subr.bf16.mxu0 0
  %119 = vmatpush2.bf16.msra.mxu0 0
  %120 = vmatprep.subr.bf16.mxu0 0
  %121 = vmatpush2.bf16.msra.mxu0 0
  %122 = vmatprep.subr.bf16.mxu0 0
  %123 = vmatpush2.bf16.msra.mxu0 0
  %124 = vmatprep.subr.bf16.mxu0 0
  %125 = vmatpush2.bf16.msra.mxu0 0
  %126 = vmatprep.subr.bf16.mxu0 0
  %127 = vmatpush2.bf16.msra.mxu0 0
  %128 = vmatprep.mubr.bf16.mxu0 0
  %129 = vmatmul.mubr.bf16.gmra.mxu0 %v87
  %v130 = vpop.f32.mrf.mxu0
  %v131 = vadd.f32 %v48, %v130
  %v132 = vpop.f32.mrf.mxu0
  %v133 = vadd.f32 %v52, %v132
  %v134 = vpop.f32.mrf.mxu0
  %v135 = vadd.f32 %v48, %v134
  %v136 = vpop.f32.mrf.mxu0
  %v137 = vadd.f32 %v52, %v136
  %138 = vdwg.mxu0
  %v139 = vld [vmem:[%s5] sm:$0xff]
  %v140 = vld [vmem:[%s5 + $0x8] sm:$0xff]
  %v141 = vld [vmem:[%s5 + $0x10] sm:$0xff]
  %v142 = vld [vmem:[%s5 + $0x18] sm:$0xff]
  %v143 = vld [vmem:[%s5 + $0x20] sm:$0xff]
  %v144 = vld [vmem:[%s5 + $0x28] sm:$0xff]
  %v145 = vld [vmem:[%s5 + $0x30] sm:$0xff]
  %v146 = vld [vmem:[%s5 + $0x38] sm:$0xff]
  %v147 = vld [vmem:[%s5 + $0x40] sm:$0xff]
  %v148 = vld [vmem:[%s5 + $0x48] sm:$0xff]
  %v149 = vld [vmem:[%s5 + $0x50] sm:$0xff]
  %v150 = vld [vmem:[%s5 + $0x58] sm:$0xff]
  %v151 = vld [vmem:[%s5 + $0x60] sm:$0xff]
  %v152 = vld [vmem:[%s5 + $0x68] sm:$0xff]
  %v153 = vld [vmem:[%s5 + $0x70] sm:$0xff]
  %v154 = vld [vmem:[%s5 + $0x78] sm:$0xff]
  %v155 = vld [vmem:[%s5 + $0x80] sm:$0xff]
  %v156 = vld [vmem:[%s5 + $0x88] sm:$0xff]
  %v157 = vld [vmem:[%s5 + $0x90] sm:$0xff]
  %v158 = vld [vmem:[%s5 + $0x98] sm:$0xff]
  %v159 = vld [vmem:[%s5 + $0xa0] sm:$0xff]
  %v160 = vld [vmem:[%s5 + $0xa8] sm:$0xff]
  %v161 = vld [vmem:[%s5 + $0xb0] sm:$0xff]
  %v162 = vld [vmem:[%s5 + $0xb8] sm:$0xff]
  %v163 = vld [vmem:[%s5 + $0xc0] sm:$0xff]
  %v164 = vld [vmem:[%s5 + $0xc8] sm:$0xff]
  %v165 = vld [vmem:[%s5 + $0xd0] sm:$0xff]
  %v166 = vld [vmem:[%s5 + $0xd8] sm:$0xff]
  %v167 = vld [vmem:[%s5 + $0xe0] sm:$0xff]
  %v168 = vld [vmem:[%s5 + $0xe8] sm:$0xff]
  %v169 = vld [vmem:[%s5 + $0xf0] sm:$0xff]
  %v170 = vld [vmem:[%s5 + $0xf8] sm:$0xff]
  %171 = vmatprep.subr.mxu0 0.0
  %172 = vmatpush1.msra.mxu0 %v154
  %173 = vmatprep.subr.mxu0 0.0
  %174 = vmatpush1.msra.mxu0 %v153
  %175 = vmatprep.subr.mxu0 0.0
  %176 = vmatpush1.msra.mxu0 %v152
  %177 = vmatprep.subr.mxu0 0.0
  %178 = vmatpush1.msra.mxu0 %v151
  %179 = vmatprep.subr.mxu0 0.0
  %180 = vmatpush1.msra.mxu0 %v150
  %181 = vmatprep.subr.mxu0 0.0
  %182 = vmatpush1.msra.mxu0 %v149
  %183 = vmatprep.subr.mxu0 0.0
  %184 = vmatpush1.msra.mxu0 %v148
  %185 = vmatprep.subr.mxu0 0.0
  %186 = vmatpush1.msra.mxu0 %v147
  %187 = vmatprep.subr.mxu0 0.0
  %188 = vmatpush1.msra.mxu0 %v146
  %189 = vmatprep.subr.mxu0 0.0
  %190 = vmatpush1.msra.mxu0 %v145
  %191 = vmatprep.subr.mxu0 0.0
  %192 = vmatpush1.msra.mxu0 %v144
  %193 = vmatprep.subr.mxu0 0.0
  %194 = vmatpush1.msra.mxu0 %v143
  %195 = vmatprep.subr.mxu0 0.0
  %196 = vmatpush1.msra.mxu0 %v142
  %197 = vmatprep.subr.mxu0 0.0
  %198 = vmatpush1.msra.mxu0 %v141
  %199 = vmatprep.subr.mxu0 0.0
  %200 = vmatpush1.msra.mxu0 %v140
  %201 = vmatprep.subr.mxu0 0.0
  %202 = vmatpush1.msra.mxu0 %v139
  %203 = vmatprep.subr.mxu0 0.0
  %204 = vmatpush2.msra.mxu0 %v170
  %205 = vmatprep.subr.mxu0 0.0
  %206 = vmatpush2.msra.mxu0 %v169
  %207 = vmatprep.subr.mxu0 0.0
  %208 = vmatpush2.msra.mxu0 %v168
  %209 = vmatprep.subr.mxu0 0.0
  %210 = vmatpush2.msra.mxu0 %v167
  %211 = vmatprep.subr.mxu0 0.0
  %212 = vmatpush2.msra.mxu0 %v166
  %213 = vmatprep.subr.mxu0 0.0
  %214 = vmatpush2.msra.mxu0 %v165
  %215 = vmatprep.subr.mxu0 0.0
  %216 = vmatpush2.msra.mxu0 %v164
  %217 = vmatprep.subr.mxu0 0.0
  %218 = vmatpush2.msra.mxu0 %v163
  %219 = vmatprep.subr.mxu0 0.0
  %220 = vmatpush2.msra.mxu0 %v162
  %221 = vmatprep.subr.mxu0 0.0
  %222 = vmatpush2.msra.mxu0 %v161
  %223 = vmatprep.subr.mxu0 0.0
  %224 = vmatpush2.msra.mxu0 %v160
  %225 = vmatprep.subr.mxu0 0.0
  %226 = vmatpush2.msra.mxu0 %v159
  %227 = vmatprep.subr.mxu0 0.0
  %228 = vmatpush2.msra.mxu0 %v158
  %229 = vmatprep.subr.mxu0 0.0
  %230 = vmatpush2.msra.mxu0 %v157
  %231 = vmatprep.subr.mxu0 0.0
  %232 = vmatpush2.msra.mxu0 %v156
  %233 = vmatprep.subr.mxu0 0.0
  %234 = vmatpush2.msra.mxu0 %v155
  %235 = vmatprep.mubr.f32.mxu0 %v133
  %236 = vmatmul.mubr.f32.gmra.mxu0 %v131
  %v237 = vpop.f32.mrf.mxu0
  %v238 = vadd.f32 0.0, %v237
  %v239 = vpop.f32.mrf.mxu0
  %240 = vmatprep.mubr.f32.mxu0 %v137
  %241 = vmatmul.mubr.f32.gmra.mxu0 %v135
  %v242 = vpop.f32.mrf.mxu0
  %v243 = vadd.f32 0.0, %v242
  %v244 = vpop.f32.mrf.mxu0
  %245 = vdwg.mxu0
  %v246 = vmul.f32 %v238, 0.125
  %v247 = vmul.f32 %v243, 0.125
  %v248 = vmul.f32 %v131, %v131
  %v249 = vmul.f32 %v133, %v133
  %v250 = vmul.f32 %v135, %v135
  %v251 = vmul.f32 %v137, %v137
  %252 = vmatprep.subr.mxu0 0.0
  %253 = vmatpush1.msra.mxu0 %v154
  %254 = vmatprep.subr.mxu0 0.0
  %255 = vmatpush1.msra.mxu0 %v153
  %256 = vmatprep.subr.mxu0 0.0
  %257 = vmatpush1.msra.mxu0 %v152
  %258 = vmatprep.subr.mxu0 0.0
  %259 = vmatpush1.msra.mxu0 %v151
  %260 = vmatprep.subr.mxu0 0.0
  %261 = vmatpush1.msra.mxu0 %v150
  %262 = vmatprep.subr.mxu0 0.0
  %263 = vmatpush1.msra.mxu0 %v149
  %264 = vmatprep.subr.mxu0 0.0
  %265 = vmatpush1.msra.mxu0 %v148
  %266 = vmatprep.subr.mxu0 0.0
  %267 = vmatpush1.msra.mxu0 %v147
  %268 = vmatprep.subr.mxu0 0.0
  %269 = vmatpush1.msra.mxu0 %v146
  %270 = vmatprep.subr.mxu0 0.0
  %271 = vmatpush1.msra.mxu0 %v145
  %272 = vmatprep.subr.mxu0 0.0
  %273 = vmatpush1.msra.mxu0 %v144
  %274 = vmatprep.subr.mxu0 0.0
  %275 = vmatpush1.msra.mxu0 %v143
  %276 = vmatprep.subr.mxu0 0.0
  %277 = vmatpush1.msra.mxu0 %v142
  %278 = vmatprep.subr.mxu0 0.0
  %279 = vmatpush1.msra.mxu0 %v141
  %280 = vmatprep.subr.mxu0 0.0
  %281 = vmatpush1.msra.mxu0 %v140
  %282 = vmatprep.subr.mxu0 0.0
  %283 = vmatpush1.msra.mxu0 %v139
  %284 = vmatprep.subr.mxu0 0.0
  %285 = vmatpush2.msra.mxu0 %v170
  %286 = vmatprep.subr.mxu0 0.0
  %287 = vmatpush2.msra.mxu0 %v169
  %288 = vmatprep.subr.mxu0 0.0
  %289 = vmatpush2.msra.mxu0 %v168
  %290 = vmatprep.subr.mxu0 0.0
  %291 = vmatpush2.msra.mxu0 %v167
  %292 = vmatprep.subr.mxu0 0.0
  %293 = vmatpush2.msra.mxu0 %v166
  %294 = vmatprep.subr.mxu0 0.0
  %295 = vmatpush2.msra.mxu0 %v165
  %296 = vmatprep.subr.mxu0 0.0
  %297 = vmatpush2.msra.mxu0 %v164
  %298 = vmatprep.subr.mxu0 0.0
  %299 = vmatpush2.msra.mxu0 %v163
  %300 = vmatprep.subr.mxu0 0.0
  %301 = vmatpush2.msra.mxu0 %v162
  %302 = vmatprep.subr.mxu0 0.0
  %303 = vmatpush2.msra.mxu0 %v161
  %304 = vmatprep.subr.mxu0 0.0
  %305 = vmatpush2.msra.mxu0 %v160
  %306 = vmatprep.subr.mxu0 0.0
  %307 = vmatpush2.msra.mxu0 %v159
  %308 = vmatprep.subr.mxu0 0.0
  %309 = vmatpush2.msra.mxu0 %v158
  %310 = vmatprep.subr.mxu0 0.0
  %311 = vmatpush2.msra.mxu0 %v157
  %312 = vmatprep.subr.mxu0 0.0
  %313 = vmatpush2.msra.mxu0 %v156
  %314 = vmatprep.subr.mxu0 0.0
  %315 = vmatpush2.msra.mxu0 %v155
  %316 = vmatprep.mubr.f32.mxu0 %v249
  %317 = vmatmul.mubr.f32.gmra.mxu0 %v248
  %v318 = vpop.f32.mrf.mxu0
  %v319 = vadd.f32 0.0, %v318
  %v320 = vpop.f32.mrf.mxu0
  %321 = vmatprep.mubr.f32.mxu0 %v251
  %322 = vmatmul.mubr.f32.gmra.mxu0 %v250
  %v323 = vpop.f32.mrf.mxu0
  %v324 = vadd.f32 0.0, %v323
  %v325 = vpop.f32.mrf.mxu0
  %326 = vdwg.mxu0
  %v327 = vmul.f32 %v319, 0.125
  %v328 = vmul.f32 %v324, 0.125
  %v329 = vmul.f32 %v246, %v246
  %v330 = vmul.f32 %v247, %v247
  %v331 = vsub.f32 %v327, %v329
  %v332 = vsub.f32 %v328, %v330
  %v333 = vld [vmem:[%s3] sm:$0x1]
  %v334 = vadd.f32 %v331, 1e-05
  %v335 = vadd.f32 %v332, 1e-05
  %v336 = vrsqrt.pop %v334
  %v337 = vrsqrt.pop %v335
  %v339 = vlaneseq
  %v340 = vshrl.u32 %v339, 7
  %v341 = vsub.s32 0, %v340
  %v342 = vrot.slane %v333, %v341
  %v344 = vmul.f32 %v342, %v336
  %v345 = vmul.f32 %v342, %v337
  %v346 = vld [vmem:[%s4] sm:$0x1]
  %v347 = vmul.f32 %v246, %v344
  %v348 = vmul.f32 %v247, %v345
  %v350 = vlaneseq
  %v351 = vshrl.u32 %v350, 7
  %v352 = vsub.s32 0, %v351
  %v353 = vrot.slane %v346, %v352
  %v355 = vsub.f32 %v353, %v347
  %v356 = vsub.f32 %v353, %v348
  %v357 = vld [vmem:[%s6] sm:$0xff]
  %v358 = vld [vmem:[%s6 + $0x8] sm:$0xff]
  %v359 = vld [vmem:[%s6 + $0x10] sm:$0xff]
  %v360 = vld [vmem:[%s6 + $0x18] sm:$0xff]
  %v361 = vld [vmem:[%s6 + $0x20] sm:$0xff]
  %v362 = vld [vmem:[%s6 + $0x28] sm:$0xff]
  %v363 = vld [vmem:[%s6 + $0x30] sm:$0xff]
  %v364 = vld [vmem:[%s6 + $0x38] sm:$0xff]
  %vm365 = vcmask 261120
  %v367 = vsel %vm365, %v344, 0
  %v370 = vsel %vm365, %v345, 0
  %372 = vmatprep.subr.mxu0 0.0
  %373 = vmatpush1.msra.mxu0 0.0
  %374 = vmatprep.subr.mxu0 0.0
  %375 = vmatpush1.msra.mxu0 0.0
  %376 = vmatprep.subr.mxu0 0.0
  %377 = vmatpush1.msra.mxu0 0.0
  %378 = vmatprep.subr.mxu0 0.0
  %379 = vmatpush1.msra.mxu0 0.0
  %380 = vmatprep.subr.mxu0 0.0
  %381 = vmatpush1.msra.mxu0 0.0
  %382 = vmatprep.subr.mxu0 0.0
  %383 = vmatpush1.msra.mxu0 0.0
  %384 = vmatprep.subr.mxu0 0.0
  %385 = vmatpush1.msra.mxu0 0.0
  %386 = vmatprep.subr.mxu0 0.0
  %387 = vmatpush1.msra.mxu0 0.0
  %388 = vmatprep.subr.mxu0 0.0
  %389 = vmatpush1.msra.mxu0 0.0
  %390 = vmatprep.subr.mxu0 0.0
  %391 = vmatpush1.msra.mxu0 0.0
  %392 = vmatprep.subr.mxu0 0.0
  %393 = vmatpush1.msra.mxu0 0.0
  %394 = vmatprep.subr.mxu0 0.0
  %395 = vmatpush1.msra.mxu0 0.0
  %396 = vmatprep.subr.mxu0 %v364
  %397 = vmatpush1.msra.mxu0 %v363
  %398 = vmatprep.subr.mxu0 %v362
  %399 = vmatpush1.msra.mxu0 %v361
  %400 = vmatprep.subr.mxu0 %v360
  %401 = vmatpush1.msra.mxu0 %v359
  %402 = vmatprep.subr.mxu0 %v358
  %403 = vmatpush1.msra.mxu0 %v357
  %404 = vmatprep.subr.mxu0 0.0
  %405 = vmatpush2.msra.mxu0 0.0
  %406 = vmatprep.subr.mxu0 0.0
  %407 = vmatpush2.msra.mxu0 0.0
  %408 = vmatprep.subr.mxu0 0.0
  %409 = vmatpush2.msra.mxu0 0.0
  %410 = vmatprep.subr.mxu0 0.0
  %411 = vmatpush2.msra.mxu0 0.0
  %412 = vmatprep.subr.mxu0 0.0
  %413 = vmatpush2.msra.mxu0 0.0
  %414 = vmatprep.subr.mxu0 0.0
  %415 = vmatpush2.msra.mxu0 0.0
  %416 = vmatprep.subr.mxu0 0.0
  %417 = vmatpush2.msra.mxu0 0.0
  %418 = vmatprep.subr.mxu0 0.0
  %419 = vmatpush2.msra.mxu0 0.0
  %420 = vmatprep.subr.mxu0 0.0
  %421 = vmatpush2.msra.mxu0 0.0
  %422 = vmatprep.subr.mxu0 0.0
  %423 = vmatpush2.msra.mxu0 0.0
  %424 = vmatprep.subr.mxu0 0.0
  %425 = vmatpush2.msra.mxu0 0.0
  %426 = vmatprep.subr.mxu0 0.0
  %427 = vmatpush2.msra.mxu0 0.0
  %428 = vmatprep.subr.mxu0 0.0
  %429 = vmatpush2.msra.mxu0 0.0
  %430 = vmatprep.subr.mxu0 0.0
  %431 = vmatpush2.msra.mxu0 0.0
  %432 = vmatprep.subr.mxu0 0.0
  %433 = vmatpush2.msra.mxu0 0.0
  %434 = vmatprep.subr.mxu0 0.0
  %435 = vmatpush2.msra.mxu0 0.0
  %436 = vmatprep.mubr.f32.mxu0 0.0
  %437 = vmatmul.mubr.f32.gmra.mxu0 %v367
  %v438 = vpop.f32.mrf.mxu0
  %v439 = vadd.f32 0.0, %v438
  %v440 = vpop.f32.mrf.mxu0
  %v441 = vadd.f32 0.0, %v440
  %442 = vmatprep.mubr.f32.mxu0 0.0
  %443 = vmatmul.mubr.f32.gmra.mxu0 %v370
  %v444 = vpop.f32.mrf.mxu0
  %v445 = vadd.f32 0.0, %v444
  %v446 = vpop.f32.mrf.mxu0
  %v447 = vadd.f32 0.0, %v446
  %448 = vdwg.mxu0
  %v450 = vsel %vm365, %v355, 0
  %v453 = vsel %vm365, %v356, 0
  %455 = vmatprep.subr.mxu0 0.0
  %456 = vmatpush1.msra.mxu0 0.0
  %457 = vmatprep.subr.mxu0 0.0
  %458 = vmatpush1.msra.mxu0 0.0
  %459 = vmatprep.subr.mxu0 0.0
  %460 = vmatpush1.msra.mxu0 0.0
  %461 = vmatprep.subr.mxu0 0.0
  %462 = vmatpush1.msra.mxu0 0.0
  %463 = vmatprep.subr.mxu0 0.0
  %464 = vmatpush1.msra.mxu0 0.0
  %465 = vmatprep.subr.mxu0 0.0
  %466 = vmatpush1.msra.mxu0 0.0
  %467 = vmatprep.subr.mxu0 0.0
  %468 = vmatpush1.msra.mxu0 0.0
  %469 = vmatprep.subr.mxu0 0.0
  %470 = vmatpush1.msra.mxu0 0.0
  %471 = vmatprep.subr.mxu0 0.0
  %472 = vmatpush1.msra.mxu0 0.0
  %473 = vmatprep.subr.mxu0 0.0
  %474 = vmatpush1.msra.mxu0 0.0
  %475 = vmatprep.subr.mxu0 0.0
  %476 = vmatpush1.msra.mxu0 0.0
  %477 = vmatprep.subr.mxu0 0.0
  %478 = vmatpush1.msra.mxu0 0.0
  %479 = vmatprep.subr.mxu0 %v364
  %480 = vmatpush1.msra.mxu0 %v363
  %481 = vmatprep.subr.mxu0 %v362
  %482 = vmatpush1.msra.mxu0 %v361
  %483 = vmatprep.subr.mxu0 %v360
  %484 = vmatpush1.msra.mxu0 %v359
  %485 = vmatprep.subr.mxu0 %v358
  %486 = vmatpush1.msra.mxu0 %v357
  %487 = vmatprep.subr.mxu0 0.0
  %488 = vmatpush2.msra.mxu0 0.0
  %489 = vmatprep.subr.mxu0 0.0
  %490 = vmatpush2.msra.mxu0 0.0
  %491 = vmatprep.subr.mxu0 0.0
  %492 = vmatpush2.msra.mxu0 0.0
  %493 = vmatprep.subr.mxu0 0.0
  %494 = vmatpush2.msra.mxu0 0.0
  %495 = vmatprep.subr.mxu0 0.0
  %496 = vmatpush2.msra.mxu0 0.0
  %497 = vmatprep.subr.mxu0 0.0
  %498 = vmatpush2.msra.mxu0 0.0
  %499 = vmatprep.subr.mxu0 0.0
  %500 = vmatpush2.msra.mxu0 0.0
  %501 = vmatprep.subr.mxu0 0.0
  %502 = vmatpush2.msra.mxu0 0.0
  %503 = vmatprep.subr.mxu0 0.0
  %504 = vmatpush2.msra.mxu0 0.0
  %505 = vmatprep.subr.mxu0 0.0
  %506 = vmatpush2.msra.mxu0 0.0
  %507 = vmatprep.subr.mxu0 0.0
  %508 = vmatpush2.msra.mxu0 0.0
  %509 = vmatprep.subr.mxu0 0.0
  %510 = vmatpush2.msra.mxu0 0.0
  %511 = vmatprep.subr.mxu0 0.0
  %512 = vmatpush2.msra.mxu0 0.0
  %513 = vmatprep.subr.mxu0 0.0
  %514 = vmatpush2.msra.mxu0 0.0
  %515 = vmatprep.subr.mxu0 0.0
  %516 = vmatpush2.msra.mxu0 0.0
  %517 = vmatprep.subr.mxu0 0.0
  %518 = vmatpush2.msra.mxu0 0.0
  %519 = vmatprep.mubr.f32.mxu0 0.0
  %520 = vmatmul.mubr.f32.gmra.mxu0 %v450
  %v521 = vpop.f32.mrf.mxu0
  %v522 = vadd.f32 0.0, %v521
  %v523 = vpop.f32.mrf.mxu0
  %v524 = vadd.f32 0.0, %v523
  %525 = vmatprep.mubr.f32.mxu0 0.0
  %526 = vmatmul.mubr.f32.gmra.mxu0 %v453
  %v527 = vpop.f32.mrf.mxu0
  %v528 = vadd.f32 0.0, %v527
  %v529 = vpop.f32.mrf.mxu0
  %v530 = vadd.f32 0.0, %v529
  %531 = vdwg.mxu0
  %v532 = vmul.f32 %v131, %v439
  %v533 = vmul.f32 %v133, %v441
  %v534 = vmul.f32 %v135, %v445
  %v535 = vmul.f32 %v137, %v447
  %v536 = vadd.f32 %v532, %v522
  %v537 = vadd.f32 %v533, %v524
  %v538 = vadd.f32 %v534, %v528
  %v539 = vadd.f32 %v535, %v530
  %v540 = vmax.f32 %v536, 0.0
  %v541 = vmax.f32 %v537, 0.0
  %v542 = vmax.f32 %v538, 0.0
  %v543 = vmax.f32 %v539, 0.0
  %v544 = vpack.c.bf16 %v542, %v540
  %v545 = vpack.c.bf16 %v543, %v541
  %v546 = vld [vmem:[%s7] sm:$0xff]
  %v547 = vld [vmem:[%s7 + $0x8] sm:$0xff]
  %v548 = vld [vmem:[%s7 + $0x10] sm:$0xff]
  %v549 = vld [vmem:[%s7 + $0x18] sm:$0xff]
  %v550 = vld [vmem:[%s7 + $0x20] sm:$0xff]
  %v551 = vld [vmem:[%s7 + $0x28] sm:$0xff]
  %v552 = vld [vmem:[%s7 + $0x30] sm:$0xff]
  %v553 = vld [vmem:[%s7 + $0x38] sm:$0xff]
  %v554 = vld [vmem:[%s7 + $0x40] sm:$0xff]
  %v555 = vld [vmem:[%s7 + $0x48] sm:$0xff]
  %v556 = vld [vmem:[%s7 + $0x50] sm:$0xff]
  %v557 = vld [vmem:[%s7 + $0x58] sm:$0xff]
  %v558 = vld [vmem:[%s7 + $0x60] sm:$0xff]
  %v559 = vld [vmem:[%s7 + $0x68] sm:$0xff]
  %v560 = vld [vmem:[%s7 + $0x70] sm:$0xff]
  %v561 = vld [vmem:[%s7 + $0x78] sm:$0xff]
  %v562 = vld [vmem:[%s7 + $0x80] sm:$0xff]
  %v563 = vld [vmem:[%s7 + $0x88] sm:$0xff]
  %v564 = vld [vmem:[%s7 + $0x90] sm:$0xff]
  %v565 = vld [vmem:[%s7 + $0x98] sm:$0xff]
  %v566 = vld [vmem:[%s7 + $0xa0] sm:$0xff]
  %v567 = vld [vmem:[%s7 + $0xa8] sm:$0xff]
  %v568 = vld [vmem:[%s7 + $0xb0] sm:$0xff]
  %v569 = vld [vmem:[%s7 + $0xb8] sm:$0xff]
  %v570 = vld [vmem:[%s7 + $0xc0] sm:$0xff]
  %v571 = vld [vmem:[%s7 + $0xc8] sm:$0xff]
  %v572 = vld [vmem:[%s7 + $0xd0] sm:$0xff]
  %v573 = vld [vmem:[%s7 + $0xd8] sm:$0xff]
  %v574 = vld [vmem:[%s7 + $0xe0] sm:$0xff]
  %v575 = vld [vmem:[%s7 + $0xe8] sm:$0xff]
  %v576 = vld [vmem:[%s7 + $0xf0] sm:$0xff]
  %v577 = vld [vmem:[%s7 + $0xf8] sm:$0xff]
  %v610 = vunpack.c.l.b16 %v546
  %v611 = vunpack.c.h.b16 %v546
  %v612 = vunpack.c.l.b16 %v547
  %v613 = vunpack.c.h.b16 %v547
  %v614 = vunpack.c.l.b16 %v548
  %v615 = vunpack.c.h.b16 %v548
  %v616 = vunpack.c.l.b16 %v549
  %v617 = vunpack.c.h.b16 %v549
  %v618 = vunpack.c.l.b16 %v550
  %v619 = vunpack.c.h.b16 %v550
  %v620 = vunpack.c.l.b16 %v551
  %v621 = vunpack.c.h.b16 %v551
  %v622 = vunpack.c.l.b16 %v552
  %v623 = vunpack.c.h.b16 %v552
  %v624 = vunpack.c.l.b16 %v553
  %v625 = vunpack.c.h.b16 %v553
  %v626 = vunpack.c.l.b16 %v554
  %v627 = vunpack.c.h.b16 %v554
  %v628 = vunpack.c.l.b16 %v555
  %v629 = vunpack.c.h.b16 %v555
  %v630 = vunpack.c.l.b16 %v556
  %v631 = vunpack.c.h.b16 %v556
  %v632 = vunpack.c.l.b16 %v557
  %v633 = vunpack.c.h.b16 %v557
  %v634 = vunpack.c.l.b16 %v558
  %v635 = vunpack.c.h.b16 %v558
  %v636 = vunpack.c.l.b16 %v559
  %v637 = vunpack.c.h.b16 %v559
  %v638 = vunpack.c.l.b16 %v560
  %v639 = vunpack.c.h.b16 %v560
  %v640 = vunpack.c.l.b16 %v561
  %v641 = vunpack.c.h.b16 %v561
  %v642 = vunpack.c.l.b16 %v562
  %v643 = vunpack.c.h.b16 %v562
  %v644 = vunpack.c.l.b16 %v563
  %v645 = vunpack.c.h.b16 %v563
  %v646 = vunpack.c.l.b16 %v564
  %v647 = vunpack.c.h.b16 %v564
  %v648 = vunpack.c.l.b16 %v565
  %v649 = vunpack.c.h.b16 %v565
  %v650 = vunpack.c.l.b16 %v566
  %v651 = vunpack.c.h.b16 %v566
  %v652 = vunpack.c.l.b16 %v567
  %v653 = vunpack.c.h.b16 %v567
  %v654 = vunpack.c.l.b16 %v568
  %v655 = vunpack.c.h.b16 %v568
  %v656 = vunpack.c.l.b16 %v569
  %v657 = vunpack.c.h.b16 %v569
  %v658 = vunpack.c.l.b16 %v570
  %v659 = vunpack.c.h.b16 %v570
  %v660 = vunpack.c.l.b16 %v571
  %v661 = vunpack.c.h.b16 %v571
  %v662 = vunpack.c.l.b16 %v572
  %v663 = vunpack.c.h.b16 %v572
  %v664 = vunpack.c.l.b16 %v573
  %v665 = vunpack.c.h.b16 %v573
  %v666 = vunpack.c.l.b16 %v574
  %v667 = vunpack.c.h.b16 %v574
  %v668 = vunpack.c.l.b16 %v575
  %v669 = vunpack.c.h.b16 %v575
  %v670 = vunpack.c.l.b16 %v576
  %v671 = vunpack.c.h.b16 %v576
  %v672 = vunpack.c.l.b16 %v577
  %v673 = vunpack.c.h.b16 %v577
  %v674 = vpack.c.b16 %v612, %v610
  %v675 = vpack.c.b16 %v613, %v611
  %v676 = vpack.c.b16 %v616, %v614
  %v677 = vpack.c.b16 %v617, %v615
  %v678 = vpack.c.b16 %v620, %v618
  %v679 = vpack.c.b16 %v621, %v619
  %v680 = vpack.c.b16 %v624, %v622
  %v681 = vpack.c.b16 %v625, %v623
  %v682 = vpack.c.b16 %v628, %v626
  %v683 = vpack.c.b16 %v629, %v627
  %v684 = vpack.c.b16 %v632, %v630
  %v685 = vpack.c.b16 %v633, %v631
  %v686 = vpack.c.b16 %v636, %v634
  %v687 = vpack.c.b16 %v637, %v635
  %v688 = vpack.c.b16 %v640, %v638
  %v689 = vpack.c.b16 %v641, %v639
  %v690 = vpack.c.b16 %v644, %v642
  %v691 = vpack.c.b16 %v645, %v643
  %v692 = vpack.c.b16 %v648, %v646
  %v693 = vpack.c.b16 %v649, %v647
  %v694 = vpack.c.b16 %v652, %v650
  %v695 = vpack.c.b16 %v653, %v651
  %v696 = vpack.c.b16 %v656, %v654
  %v697 = vpack.c.b16 %v657, %v655
  %v698 = vpack.c.b16 %v660, %v658
  %v699 = vpack.c.b16 %v661, %v659
  %v700 = vpack.c.b16 %v664, %v662
  %v701 = vpack.c.b16 %v665, %v663
  %v702 = vpack.c.b16 %v668, %v666
  %v703 = vpack.c.b16 %v669, %v667
  %v704 = vpack.c.b16 %v672, %v670
  %v705 = vpack.c.b16 %v673, %v671
  %738 = vmatprep.subr.bf16.mxu0 %v689
  %739 = vmatpush1.bf16.msra.mxu0 %v688
  %740 = vmatprep.subr.bf16.mxu0 %v687
  %741 = vmatpush1.bf16.msra.mxu0 %v686
  %742 = vmatprep.subr.bf16.mxu0 %v685
  %743 = vmatpush1.bf16.msra.mxu0 %v684
  %744 = vmatprep.subr.bf16.mxu0 %v683
  %745 = vmatpush1.bf16.msra.mxu0 %v682
  %746 = vmatprep.subr.bf16.mxu0 %v681
  %747 = vmatpush1.bf16.msra.mxu0 %v680
  %748 = vmatprep.subr.bf16.mxu0 %v679
  %749 = vmatpush1.bf16.msra.mxu0 %v678
  %750 = vmatprep.subr.bf16.mxu0 %v677
  %751 = vmatpush1.bf16.msra.mxu0 %v676
  %752 = vmatprep.subr.bf16.mxu0 %v675
  %753 = vmatpush1.bf16.msra.mxu0 %v674
  %754 = vmatprep.subr.bf16.mxu0 %v705
  %755 = vmatpush2.bf16.msra.mxu0 %v704
  %756 = vmatprep.subr.bf16.mxu0 %v703
  %757 = vmatpush2.bf16.msra.mxu0 %v702
  %758 = vmatprep.subr.bf16.mxu0 %v701
  %759 = vmatpush2.bf16.msra.mxu0 %v700
  %760 = vmatprep.subr.bf16.mxu0 %v699
  %761 = vmatpush2.bf16.msra.mxu0 %v698
  %762 = vmatprep.subr.bf16.mxu0 %v697
  %763 = vmatpush2.bf16.msra.mxu0 %v696
  %764 = vmatprep.subr.bf16.mxu0 %v695
  %765 = vmatpush2.bf16.msra.mxu0 %v694
  %766 = vmatprep.subr.bf16.mxu0 %v693
  %767 = vmatpush2.bf16.msra.mxu0 %v692
  %768 = vmatprep.subr.bf16.mxu0 %v691
  %769 = vmatpush2.bf16.msra.mxu0 %v690
  %770 = vmatprep.mubr.bf16.mxu0 %v545
  %771 = vmatmul.mubr.bf16.gmra.mxu0 %v544
  %v772 = vpop.f32.mrf.mxu0
  %v773 = vadd.f32 0.0, %v772
  %v774 = vpop.f32.mrf.mxu0
  %v775 = vadd.f32 0.0, %v774
  %v776 = vpop.f32.mrf.mxu0
  %v777 = vadd.f32 0.0, %v776
  %v778 = vpop.f32.mrf.mxu0
  %v779 = vadd.f32 0.0, %v778
  %780 = vdwg.mxu0
  %v781 = vld [vmem:[%s8] sm:$0xf]
  %v782 = vld [vmem:[%s8 + $0x4] sm:$0xf]
  %v783 = vpack.c.bf16 %v777, %v773
  %v784 = vpack.c.bf16 %v779, %v775
  %v785 = vld [vmem:[%s9] sm:$0x3]
  %v787 = vlaneseq
  %v788 = vshrl.u32 %v787, 7
  %v789 = vsub.s32 0, %v788
  %v790 = vrot.slane %v785, %v789
  %v791 = vlaneseq
  %v792 = vshrl.u32 %v791, 7
  %v793 = vsub.s32 1, %v792
  %v794 = vrot.slane %v785, %v793
  %v799 = vunpack.c.l.b16 %v781
  %v800 = vunpack.c.l.b16 %v782
  %v801 = vpack.c.b16 %v800, %v799
  %vm802 = vcmask 130048
  %v804 = vsel %vm802, %v801, 0
  %806 = vmatprep.subr.bf16.mxu0 0
  %807 = vmatpush1.bf16.msra.mxu0 0
  %808 = vmatprep.subr.bf16.mxu0 0
  %809 = vmatpush1.bf16.msra.mxu0 0
  %810 = vmatprep.subr.bf16.mxu0 0
  %811 = vmatpush1.bf16.msra.mxu0 0
  %812 = vmatprep.subr.bf16.mxu0 0
  %813 = vmatpush1.bf16.msra.mxu0 0
  %814 = vmatprep.subr.bf16.mxu0 0
  %815 = vmatpush1.bf16.msra.mxu0 0
  %816 = vmatprep.subr.bf16.mxu0 0
  %817 = vmatpush1.bf16.msra.mxu0 0
  %818 = vmatprep.subr.bf16.mxu0 0
  %819 = vmatpush1.bf16.msra.mxu0 0
  %820 = vmatprep.subr.bf16.mxu0 %v784
  %821 = vmatpush1.bf16.msra.mxu0 %v783
  %822 = vmatprep.subr.bf16.mxu0 0
  %823 = vmatpush2.bf16.msra.mxu0 0
  %824 = vmatprep.subr.bf16.mxu0 0
  %825 = vmatpush2.bf16.msra.mxu0 0
  %826 = vmatprep.subr.bf16.mxu0 0
  %827 = vmatpush2.bf16.msra.mxu0 0
  %828 = vmatprep.subr.bf16.mxu0 0
  %829 = vmatpush2.bf16.msra.mxu0 0
  %830 = vmatprep.subr.bf16.mxu0 0
  %831 = vmatpush2.bf16.msra.mxu0 0
  %832 = vmatprep.subr.bf16.mxu0 0
  %833 = vmatpush2.bf16.msra.mxu0 0
  %834 = vmatprep.subr.bf16.mxu0 0
  %835 = vmatpush2.bf16.msra.mxu0 0
  %836 = vmatprep.subr.bf16.mxu0 0
  %837 = vmatpush2.bf16.msra.mxu0 0
  %838 = vmatprep.mubr.bf16.mxu0 0
  %839 = vmatmul.mubr.bf16.gmra.mxu0 %v804
  %v840 = vpop.f32.mrf.mxu0
  %v841 = vadd.f32 %v790, %v840
  %v842 = vpop.f32.mrf.mxu0
  %v843 = vadd.f32 %v794, %v842
  %v844 = vpop.f32.mrf.mxu0
  %v845 = vadd.f32 %v790, %v844
  %v846 = vpop.f32.mrf.mxu0
  %v847 = vadd.f32 %v794, %v846
  %848 = vdwg.mxu0
  %v849 = vmax.f32 %v841, 0.0
  %v850 = vmax.f32 %v843, 0.0
  %v851 = vmax.f32 %v845, 0.0
  %v852 = vmax.f32 %v847, 0.0
  %853 = vst [vmem:[%s10] sm:$0xff] %v849
  %854 = vst [vmem:[%s10 + $0x8] sm:$0xff] %v850
  %855 = vst [vmem:[%s10 + $0x10] sm:$0xff] %v851
  %856 = vst [vmem:[%s10 + $0x18] sm:$0xff] %v852
  // Predicated region
  $region42: #{stgcn_forward.1} parent=0 // pred_check
    _
  $region43: #{stgcn_forward.1} parent=0 // pred_check_branch
    %858 = sbr.rel (0) target = $region45
  $region44: #{stgcn_forward.1} parent=0 // pred_region
    _
  $region45: #{stgcn_forward.1} parent=0 // pred_fallthru
    _
  // Predicated region
  $region46: #{stgcn_forward.1} parent=0 // pred_check
    _
  $region47: #{stgcn_forward.1} parent=0 // pred_check_branch
    %860 = sbr.rel (0) target = $region49
  $region48: #{stgcn_forward.1} parent=0 // pred_region
    _
  $region49: #{stgcn_forward.1} parent=0 // pred_fallthru
    _

</llo_original>
